<compile_context>
chip_gen: v7x
topology: tpu7x:2x2x1
jax: 0.10.0
libtpu: 0.0.40
codegen_flags: <defaults>
</compile_context>

<pallas_src>
import jax
import jax.numpy as jnp
from jax.experimental import pallas as pl
from jax.experimental.pallas import tpu as pltpu


# Contract the last dim of lhs with the last dim of rhs ("NT" matmul).
_NT_DIMS = (((1,), (1,)), ((), ()))


def _make_kernel(n_agents, mxu_dtype):
    def kernel(*args):
        x_refs = args[:n_agents]                      # each (tile_b, d_i)
        w1_refs = args[n_agents:2 * n_agents]         # each (H, d_i)  (= W1_i^T)
        b1_ref, w2t_ref, b2_ref, w3t_ref, b3_ref, out_ref = args[2 * n_agents:]

        # ---- fc1 with fused concat:
        #      h1T[h, b] = sum_i sum_d W1T_i[h, d] * x_i[b, d]
        acc = jax.lax.dot_general(w1_refs[0][...], x_refs[0][...],
                                  dimension_numbers=_NT_DIMS,
                                  preferred_element_type=jnp.float32)
        for i in range(1, n_agents):
            acc = acc + jax.lax.dot_general(w1_refs[i][...], x_refs[i][...],
                                            dimension_numbers=_NT_DIMS,
                                            preferred_element_type=jnp.float32)
        h1 = jnp.tanh(acc + b1_ref[...])              # (H, tile_b)  f32

        # ---- fc2 (MXU inputs optionally bf16, accumulate f32, tanh f32)
        h2 = jnp.tanh(
            jnp.dot(w2t_ref[...], h1.astype(mxu_dtype),
                    preferred_element_type=jnp.float32) + b2_ref[...])

        # ---- fc3 (+ scalar bias read from SMEM)
        v = jnp.dot(w3t_ref[...], h2.astype(mxu_dtype),
                    preferred_element_type=jnp.float32) + b3_ref[0]
        out_ref[...] = v.astype(out_ref.dtype)        # (1, tile_b), lane-dense
    return kernel


def _pick_tile_b(B):
    # Aim for >=2 grid steps at production batch sizes (v7x megacore), a slab
    # big enough to amortize the ~0.35us/step overhead, bounded for VMEM.
    for cand in (2048, 1024, 512, 256, 128):
        if B > cand and B % cand == 0:
            return cand
    return B


def _pad(n, m):
    return ((n + m - 1) // m) * m


def critic_ctde_forward(state_list, params, *, tile_b=None, use_bf16_inputs=True):
    """Pallas forward for MLP_Critic_CTDE.

    state_list : list of [B, obs_dim_i] arrays (one per agent)
    params     : dict with w1 (D,H), b1 (H,), w2 (H,H), b2 (H,), w3 (H,1), b3 (1,)
                 (weights stored (in_features, out_features))
    """
    n_agents = len(state_list)
    obs_dims = [int(s.shape[1]) for s in state_list]
    B = int(state_list[0].shape[0])
    H = int(params["w1"].shape[1])

    if tile_b is None:
        tile_b = _pick_tile_b(B)
    assert B % tile_b == 0, "pad B or pass a tile_b that divides it"
    assert tile_b == B or tile_b % 128 == 0, \
        "when tiling the batch, tile_b must be a multiple of 128 (lane axis)"
    num_tiles = B // tile_b

    in_dtype = jnp.bfloat16 if use_bf16_inputs else jnp.float32

    # Per-agent inputs (no concat in HBM) + per-agent row-slices of fc1's
    # weight, pre-transposed to (H, d_i).  Weight transposes are tiny one-offs.
    states = [jnp.asarray(s).astype(in_dtype) for s in state_list]
    w1 = jnp.asarray(params["w1"])
    w1t_slices = []
    off = 0
    for d in obs_dims:
        w1t_slices.append(w1[off:off + d, :].T.astype(in_dtype))      # (H, d_i)
        off += d
    w2t = jnp.asarray(params["w2"]).T.astype(in_dtype)                # (H, H)
    w3t = jnp.asarray(params["w3"]).T.astype(in_dtype)                # (1, H)
    b1c = jnp.asarray(params["b1"], jnp.float32).reshape(H, 1)
    b2c = jnp.asarray(params["b2"], jnp.float32).reshape(H, 1)
    b3s = jnp.asarray(params["b3"], jnp.float32).reshape(1)           # SMEM scalar

    resident = lambda shape: pl.BlockSpec(shape, lambda i: (0, 0))
    in_specs = (
        [pl.BlockSpec((tile_b, d), lambda i: (i, 0)) for d in obs_dims]  # state tiles
        + [resident((H, d)) for d in obs_dims]                           # W1T slices
        + [resident((H, 1)),                                             # b1
           resident((H, H)),                                             # W2T
           resident((H, 1)),                                             # b2
           resident((1, H)),                                             # W3T
           pl.BlockSpec(memory_space=pltpu.MemorySpace.SMEM)]            # b3 scalar
    )
    # Lane-dense output: a single (1, B) row, each grid step writes lanes
    # [i*tile_b, (i+1)*tile_b).  Reshaped to (B, 1) in the wrapper.
    out_specs = pl.BlockSpec((1, tile_b), lambda i: (0, i))

    # Rough VMEM budget (double-buffered tiles + resident weights), 2x margin.
    isz = jnp.dtype(in_dtype).itemsize
    vmem = 0
    for d in obs_dims:
        vmem += 2 * _pad(tile_b, 16) * _pad(d, 128) * isz                # state tiles
        vmem += 2 * _pad(H, 16) * _pad(d, 128) * isz                     # W1T_i
    vmem += 2 * _pad(H, 16) * _pad(H, 128) * isz                         # W2T
    vmem += 2 * 16 * _pad(H, 128) * isz                                  # W3T
    vmem += 4 * _pad(H, 8) * 128 * 4                                     # b1, b2
    vmem += 2 * 8 * _pad(tile_b, 128) * 4                                # out tiles
    vmem_limit = int(min(64 * 1024 * 1024, max(32 * 1024 * 1024, 2 * vmem)))

    vt = pl.pallas_call(
        _make_kernel(n_agents, in_dtype),
        out_shape=jax.ShapeDtypeStruct((1, B), jnp.float32),
        grid_spec=pltpu.PrefetchScalarGridSpec(
            num_scalar_prefetch=0,
            grid=(num_tiles,),
            in_specs=in_specs,
            out_specs=out_specs,
        ),
        compiler_params=pltpu.CompilerParams(
            dimension_semantics=("parallel",),
            vmem_limit_bytes=vmem_limit),
    )(*states, *w1t_slices, b1c, w2t, b2c, w3t, b3s)
    return vt.reshape(B, 1)


def init_params(key, obs_dim_n, hidden):
    """Deterministic init mirroring nn.Linear's default U(-1/sqrt(fan_in), +)."""
    D = sum(obs_dim_n)

    def linear(k, fan_in, fan_out):
        kw, kb = jax.random.split(k)
        bound = 1.0 / jnp.sqrt(jnp.float32(fan_in))
        # stored as (in, out) so the math is x @ W + b
        w = jax.random.uniform(kw, (fan_in, fan_out), jnp.float32, -bound, bound)
        b = jax.random.uniform(kb, (fan_out,), jnp.float32, -bound, bound)
        return w, b

    k1, k2, k3 = jax.random.split(key, 3)
    w1, b1 = linear(k1, D, hidden)
    w2, b2 = linear(k2, hidden, hidden)
    w3, b3 = linear(k3, hidden, 1)
    return dict(w1=w1, b1=b1, w2=w2, b2=b2, w3=w3, b3=b3)


def _reference(state_list, p):
    x = jnp.concatenate(state_list, axis=1)
    h1 = jnp.tanh(jnp.dot(x, p["w1"], precision="highest") + p["b1"])
    h2 = jnp.tanh(jnp.dot(h1, p["w2"], precision="highest") + p["b2"])
    return jnp.dot(h2, p["w3"], precision="highest") + p["b3"].reshape(1, 1)


if __name__ == "__main__":
    # Small synthetic CTDE setup: 3 agents, obs dims [6, 6, 6], hidden 32, batch 8.
    obs_dim_n = [6, 6, 6]
    hidden = 32
    batch = 8

    key = jax.random.PRNGKey(0)
    kp, *ks = jax.random.split(key, 1 + len(obs_dim_n))
    params = init_params(kp, obs_dim_n, hidden)
    state_list = [jax.random.normal(k, (batch, d), jnp.float32)
                  for k, d in zip(ks, obs_dim_n)]
    v_ref = _reference(state_list, params)

    # Exact-math path (f32 MXU inputs): tight check of the transposed dataflow.
    v32 = jax.block_until_ready(
        critic_ctde_forward(state_list, params, use_bf16_inputs=False))
    assert v32.shape == (batch, 1)
    assert jnp.allclose(v32, v_ref, atol=1e-4, rtol=1e-4)

    # bf16-MXU-input path (halves the dominant state HBM read): looser check.
    vbf = jax.block_until_ready(
        critic_ctde_forward(state_list, params, use_bf16_inputs=True))
    assert vbf.shape == (batch, 1)
    assert jnp.allclose(vbf, v_ref, atol=3e-2, rtol=3e-2)

    # Multi-tile path: exercises the batch grid and the lane-dense (1, tile_b)
    # output writeback with more than one grid step.
    kb = jax.random.PRNGKey(1)
    kbs = jax.random.split(kb, len(obs_dim_n))
    big_states = [jax.random.normal(k, (256, d), jnp.float32)
                  for k, d in zip(kbs, obs_dim_n)]
    vbig = jax.block_until_ready(
        critic_ctde_forward(big_states, params, tile_b=128,
                            use_bf16_inputs=False))
    assert vbig.shape == (256, 1)
    assert jnp.allclose(vbig, _reference(big_states, params),
                        atol=1e-4, rtol=1e-4)

    print("KERNEL_OK")
</pallas_src>

<mosaic_0001>
module attributes {stable_mosaic.version = 11 : i64} {
  func.func @kernel(%arg0: i32, %arg1: memref<8x6xf32, #tpu.memory_space<vmem>>, %arg2: memref<8x6xf32, #tpu.memory_space<vmem>>, %arg3: memref<8x6xf32, #tpu.memory_space<vmem>>, %arg4: memref<32x6xf32, #tpu.memory_space<vmem>>, %arg5: memref<32x6xf32, #tpu.memory_space<vmem>>, %arg6: memref<32x6xf32, #tpu.memory_space<vmem>>, %arg7: memref<32x1xf32, #tpu.memory_space<vmem>>, %arg8: memref<32x32xf32, #tpu.memory_space<vmem>>, %arg9: memref<32x1xf32, #tpu.memory_space<vmem>>, %arg10: memref<1x32xf32, #tpu.memory_space<vmem>>, %arg11: memref<1xf32, #tpu.memory_space<smem>>, %arg12: memref<1x8xf32, #tpu.memory_space<vmem>>) attributes {dimension_semantics = [#tpu.dimension_semantics<parallel>], iteration_bounds = array<i64: 1>, scalar_prefetch = 0 : i64, scratch_operands = 0 : i64, tpu.core_type = #tpu.core_type<tc>, window_params = [{transform_indices = @transform_0, window_bounds = array<i64: 8, 6>}, {transform_indices = @transform_1, window_bounds = array<i64: 8, 6>}, {transform_indices = @transform_2, window_bounds = array<i64: 8, 6>}, {pipeline_mode = #tpu.pipeline_mode<synchronous>, transform_indices = @transform_3, window_bounds = array<i64: 32, 6>}, {pipeline_mode = #tpu.pipeline_mode<synchronous>, transform_indices = @transform_4, window_bounds = array<i64: 32, 6>}, {pipeline_mode = #tpu.pipeline_mode<synchronous>, transform_indices = @transform_5, window_bounds = array<i64: 32, 6>}, {pipeline_mode = #tpu.pipeline_mode<synchronous>, transform_indices = @transform_6, window_bounds = array<i64: 32, 1>}, {pipeline_mode = #tpu.pipeline_mode<synchronous>, transform_indices = @transform_7, window_bounds = array<i64: 32, 32>}, {pipeline_mode = #tpu.pipeline_mode<synchronous>, transform_indices = @transform_8, window_bounds = array<i64: 32, 1>}, {pipeline_mode = #tpu.pipeline_mode<synchronous>, transform_indices = @transform_9, window_bounds = array<i64: 1, 32>}, {transform_indices = @transform_10, window_bounds = array<i64: 1>}, {transform_indices = @transform_11, window_bounds = array<i64: 1, 8>}]} {
    %c0 = arith.constant 0 : index
    %c0_0 = arith.constant 0 : index
    %0 = vector.load %arg4[%c0, %c0_0] : memref<32x6xf32, #tpu.memory_space<vmem>>, vector<32x6xf32>
    %c0_1 = arith.constant 0 : index
    %c0_2 = arith.constant 0 : index
    %1 = vector.load %arg1[%c0_1, %c0_2] : memref<8x6xf32, #tpu.memory_space<vmem>>, vector<8x6xf32>
    %cst = arith.constant dense<0.000000e+00> : vector<32x8xf32>
    %2 = tpu.matmul %0, %1, %cst {dimension_numbers = #tpu.dot_dimension_numbers<[1], [1], [0], [0], [0, 0, 1, 0], [], []>} : vector<32x6xf32>, vector<8x6xf32>, vector<32x8xf32> -> vector<32x8xf32>
    %c0_3 = arith.constant 0 : index
    %c0_4 = arith.constant 0 : index
    %3 = vector.load %arg5[%c0_3, %c0_4] : memref<32x6xf32, #tpu.memory_space<vmem>>, vector<32x6xf32>
    %c0_5 = arith.constant 0 : index
    %c0_6 = arith.constant 0 : index
    %4 = vector.load %arg2[%c0_5, %c0_6] : memref<8x6xf32, #tpu.memory_space<vmem>>, vector<8x6xf32>
    %cst_7 = arith.constant dense<0.000000e+00> : vector<32x8xf32>
    %5 = tpu.matmul %3, %4, %cst_7 {dimension_numbers = #tpu.dot_dimension_numbers<[1], [1], [0], [0], [0, 0, 1, 0], [], []>} : vector<32x6xf32>, vector<8x6xf32>, vector<32x8xf32> -> vector<32x8xf32>
    %6 = arith.addf %2, %5 : vector<32x8xf32>
    %c0_8 = arith.constant 0 : index
    %c0_9 = arith.constant 0 : index
    %7 = vector.load %arg6[%c0_8, %c0_9] : memref<32x6xf32, #tpu.memory_space<vmem>>, vector<32x6xf32>
    %c0_10 = arith.constant 0 : index
    %c0_11 = arith.constant 0 : index
    %8 = vector.load %arg3[%c0_10, %c0_11] : memref<8x6xf32, #tpu.memory_space<vmem>>, vector<8x6xf32>
    %cst_12 = arith.constant dense<0.000000e+00> : vector<32x8xf32>
    %9 = tpu.matmul %7, %8, %cst_12 {dimension_numbers = #tpu.dot_dimension_numbers<[1], [1], [0], [0], [0, 0, 1, 0], [], []>} : vector<32x6xf32>, vector<8x6xf32>, vector<32x8xf32> -> vector<32x8xf32>
    %10 = arith.addf %6, %9 : vector<32x8xf32>
    %c0_13 = arith.constant 0 : index
    %c0_14 = arith.constant 0 : index
    %11 = vector.load %arg7[%c0_13, %c0_14] : memref<32x1xf32, #tpu.memory_space<vmem>>, vector<32x1xf32>
    %12 = vector.broadcast %11 : vector<32x1xf32> to vector<32x8xf32>
    %13 = arith.addf %10, %12 : vector<32x8xf32>
    %14 = math.tanh %13 : vector<32x8xf32>
    %c0_15 = arith.constant 0 : index
    %c0_16 = arith.constant 0 : index
    %15 = vector.load %arg8[%c0_15, %c0_16] : memref<32x32xf32, #tpu.memory_space<vmem>>, vector<32x32xf32>
    %cst_17 = arith.constant dense<0.000000e+00> : vector<32x8xf32>
    %16 = tpu.matmul %15, %14, %cst_17 {dimension_numbers = #tpu.dot_dimension_numbers<[1], [0], [0], [1], [0, 0, 1, 1], [], []>} : vector<32x32xf32>, vector<32x8xf32>, vector<32x8xf32> -> vector<32x8xf32>
    %c0_18 = arith.constant 0 : index
    %c0_19 = arith.constant 0 : index
    %17 = vector.load %arg9[%c0_18, %c0_19] : memref<32x1xf32, #tpu.memory_space<vmem>>, vector<32x1xf32>
    %18 = vector.broadcast %17 : vector<32x1xf32> to vector<32x8xf32>
    %19 = arith.addf %16, %18 : vector<32x8xf32>
    %20 = math.tanh %19 : vector<32x8xf32>
    %c0_20 = arith.constant 0 : index
    %c0_21 = arith.constant 0 : index
    %21 = vector.load %arg10[%c0_20, %c0_21] : memref<1x32xf32, #tpu.memory_space<vmem>>, vector<1x32xf32>
    %cst_22 = arith.constant dense<0.000000e+00> : vector<1x8xf32>
    %22 = tpu.matmul %21, %20, %cst_22 {dimension_numbers = #tpu.dot_dimension_numbers<[1], [0], [0], [1], [0, 0, 1, 1], [], []>} : vector<1x32xf32>, vector<32x8xf32>, vector<1x8xf32> -> vector<1x8xf32>
    %c0_23 = arith.constant 0 : index
    %23 = memref.load %arg11[%c0_23] : memref<1xf32, #tpu.memory_space<smem>>
    %24 = vector.broadcast %23 : f32 to vector<1x8xf32>
    %25 = arith.addf %22, %24 : vector<1x8xf32>
    %c0_24 = arith.constant 0 : index
    %c0_25 = arith.constant 0 : index
    %26 = vector.load %arg12[%c0_24, %c0_25] : memref<1x8xf32, #tpu.memory_space<vmem>>, vector<1x8xf32>
    tpu.vector_store %arg12[%c0_24, %c0_25], %25 {strides = array<i32>} : memref<1x8xf32, #tpu.memory_space<vmem>>, vector<1x8xf32>,
    return
  }
  func.func @transform_0(%arg0: i32) -> (i32, i32) {
    %c0_i32 = arith.constant 0 : i32
    %c0_i32_0 = arith.constant 0 : i32
    return %arg0, %c0_i32 : i32, i32
  }
  func.func @transform_1(%arg0: i32) -> (i32, i32) {
    %c0_i32 = arith.constant 0 : i32
    %c0_i32_0 = arith.constant 0 : i32
    return %arg0, %c0_i32 : i32, i32
  }
  func.func @transform_2(%arg0: i32) -> (i32, i32) {
    %c0_i32 = arith.constant 0 : i32
    %c0_i32_0 = arith.constant 0 : i32
    return %arg0, %c0_i32 : i32, i32
  }
  func.func @transform_3(%arg0: i32) -> (i32, i32) {
    %c0_i32 = arith.constant 0 : i32
    %c0_i32_0 = arith.constant 0 : i32
    %c0_i32_1 = arith.constant 0 : i32
    return %c0_i32, %c0_i32_0 : i32, i32
  }
  func.func @transform_4(%arg0: i32) -> (i32, i32) {
    %c0_i32 = arith.constant 0 : i32
    %c0_i32_0 = arith.constant 0 : i32
    %c0_i32_1 = arith.constant 0 : i32
    return %c0_i32, %c0_i32_0 : i32, i32
  }
  func.func @transform_5(%arg0: i32) -> (i32, i32) {
    %c0_i32 = arith.constant 0 : i32
    %c0_i32_0 = arith.constant 0 : i32
    %c0_i32_1 = arith.constant 0 : i32
    return %c0_i32, %c0_i32_0 : i32, i32
  }
  func.func @transform_6(%arg0: i32) -> (i32, i32) {
    %c0_i32 = arith.constant 0 : i32
    %c0_i32_0 = arith.constant 0 : i32
    %c0_i32_1 = arith.constant 0 : i32
    return %c0_i32, %c0_i32_0 : i32, i32
  }
  func.func @transform_7(%arg0: i32) -> (i32, i32) {
    %c0_i32 = arith.constant 0 : i32
    %c0_i32_0 = arith.constant 0 : i32
    %c0_i32_1 = arith.constant 0 : i32
    return %c0_i32, %c0_i32_0 : i32, i32
  }
  func.func @transform_8(%arg0: i32) -> (i32, i32) {
    %c0_i32 = arith.constant 0 : i32
    %c0_i32_0 = arith.constant 0 : i32
    %c0_i32_1 = arith.constant 0 : i32
    return %c0_i32, %c0_i32_0 : i32, i32
  }
  func.func @transform_9(%arg0: i32) -> (i32, i32) {
    %c0_i32 = arith.constant 0 : i32
    %c0_i32_0 = arith.constant 0 : i32
    %c0_i32_1 = arith.constant 0 : i32
    return %c0_i32, %c0_i32_0 : i32, i32
  }
  func.func @transform_10(%arg0: i32) -> i32 {
    %c0_i32 = arith.constant 0 : i32
    %c0_i32_0 = arith.constant 0 : i32
    return %c0_i32 : i32
  }
  func.func @transform_11(%arg0: i32) -> (i32, i32) {
    %c0_i32 = arith.constant 0 : i32
    %c0_i32_0 = arith.constant 0 : i32
    return %c0_i32, %arg0 : i32, i32
  }
}

</mosaic_0001>

<llo_original>
// kernel: tpu_custom_call.1
$region0: #{tpu_custom_call.1}
  #allocation0 [shape = 'u32[]', space=smem, size = 0x4, offset = 0x4, fixed_abs, tag = 'smem constant byte address 0x4 - core index']
  #allocation1 [shape = 'u32[144,128]{1,0:T(1,128)}', space=vmem, size = 0x12000, scoped, tag = 'internal scratch']
  #allocation2 [shape = 'f32[1]{0:T(128)S(6)}', space=smem, size = 0x200, scoped, tag = 'scoped memory for tpu_custom_call.1']
  %s0 = inlined_call_operand.vmem [shape: f32[8,6], index: 0, kind: input, shape index: {}]
  %s1 = inlined_call_operand.vmem [shape: f32[8,6], index: 1, kind: input, shape index: {}]
  %s2 = inlined_call_operand.vmem [shape: f32[8,6], index: 2, kind: input, shape index: {}]
  %s3 = inlined_call_operand.vmem [shape: f32[32,6], index: 3, kind: input, shape index: {}]
  %s4 = inlined_call_operand.vmem [shape: f32[32,6], index: 4, kind: input, shape index: {}]
  %s5 = inlined_call_operand.vmem [shape: f32[32,6], index: 5, kind: input, shape index: {}]
  %s6 = inlined_call_operand.vmem [shape: f32[32,1], index: 6, kind: input, shape index: {}]
  %s7 = inlined_call_operand.vmem [shape: f32[32,32], index: 7, kind: input, shape index: {}]
  %s8 = inlined_call_operand.vmem [shape: f32[32,1], index: 8, kind: input, shape index: {}]
  %s9 = inlined_call_operand.vmem [shape: f32[1,32], index: 9, kind: input, shape index: {}]
  %s10 = inlined_call_operand.<no memory space> [shape: f32[1], index: 10, kind: input, shape index: {}]
  %s11 = inlined_call_operand.hbm [shape: f32[1,8], index: 11, kind: output, shape index: {}]
  %s12 = sld [smem:[#allocation0]]
  $region54: #{tpu_custom_call.1} parent=0
    _
  %s14 = ssub.s32 1, %s12
  %s15 = scalar_select 0, %s14, %s12
  %16 = sst [smem:[#allocation2]] %s10
  $region1: #{tpu_custom_call.1} parent=0
    #allocation3 [shape = 'u8[512]{0}', space=vmem, size = 0x400, scoped, tag = 'output window, operand 0, single buffered']
    #allocation4 [shape = 's32[1]{0}', space=sflag, size = 0x4, scoped, tag = 'scoped memory for tpu_custom_call.1']
    %17 = vsyncpa [#allocation4], 0
    // Predicated region
    $region2: #{tpu_custom_call.1} parent=1 // pred_check
      _
    $region3: #{tpu_custom_call.1} parent=1 // pred_check_branch
      %19 = sbr.rel (0) target = $region5
    $region4: #{tpu_custom_call.1} parent=1 // pred_region
      _
    $region5: #{tpu_custom_call.1} parent=1 // pred_fallthru
      _
    // Predicated region
    $region6: #{tpu_custom_call.1} parent=1 // pred_check
      _
    $region7: #{tpu_custom_call.1} parent=1 // pred_check_branch
      %21 = sbr.rel (0) target = $region9
    $region8: #{tpu_custom_call.1} parent=1 // pred_region
      _
    $region9: #{tpu_custom_call.1} parent=1 // pred_fallthru
      _
    // Predicated region
    $region10: #{tpu_custom_call.1} parent=1 // pred_check
      _
    $region11: #{tpu_custom_call.1} parent=1 // pred_check_branch
      %23 = sbr.rel (0) target = $region13
    $region12: #{tpu_custom_call.1} parent=1 // pred_region
      _
    $region13: #{tpu_custom_call.1} parent=1 // pred_fallthru
      _
    // Predicated region
    $region14: #{tpu_custom_call.1} parent=1 // pred_check
      _
    $region15: #{tpu_custom_call.1} parent=1 // pred_check_branch
      %25 = sbr.rel (0) target = $region17
    $region16: #{tpu_custom_call.1} parent=1 // pred_region
      _
    $region17: #{tpu_custom_call.1} parent=1 // pred_fallthru
      _
    // Predicated region
    $region18: #{tpu_custom_call.1} parent=1 // pred_check
      _
    $region19: #{tpu_custom_call.1} parent=1 // pred_check_branch
      %27 = sbr.rel (0) target = $region21
    $region20: #{tpu_custom_call.1} parent=1 // pred_region
      _
    $region21: #{tpu_custom_call.1} parent=1 // pred_fallthru
      _
    // Predicated region
    $region22: #{tpu_custom_call.1} parent=1 // pred_check
      _
    $region23: #{tpu_custom_call.1} parent=1 // pred_check_branch
      %29 = sbr.rel (0) target = $region25
    $region24: #{tpu_custom_call.1} parent=1 // pred_region
      _
    $region25: #{tpu_custom_call.1} parent=1 // pred_fallthru
      _
    // Predicated region
    $region26: #{tpu_custom_call.1} parent=1 // pred_check
      _
    $region27: #{tpu_custom_call.1} parent=1 // pred_check_branch
      %31 = sbr.rel (0) target = $region29
    $region28: #{tpu_custom_call.1} parent=1 // pred_region
      _
    $region29: #{tpu_custom_call.1} parent=1 // pred_fallthru
      _
    // Predicated region
    $region30: #{tpu_custom_call.1} parent=1 // pred_check
      _
    $region31: #{tpu_custom_call.1} parent=1 // pred_check_branch
      %33 = sbr.rel (0) target = $region33
    $region32: #{tpu_custom_call.1} parent=1 // pred_region
      _
    $region33: #{tpu_custom_call.1} parent=1 // pred_fallthru
      _
    // Predicated region
    $region34: #{tpu_custom_call.1} parent=1 // pred_check
      _
    $region35: #{tpu_custom_call.1} parent=1 // pred_check_branch
      %35 = sbr.rel (0) target = $region37
    $region36: #{tpu_custom_call.1} parent=1 // pred_region
      _
    $region37: #{tpu_custom_call.1} parent=1 // pred_fallthru
      _
    // Predicated region
    $region38: #{tpu_custom_call.1} parent=1 // pred_check
      _
    $region39: #{tpu_custom_call.1} parent=1 // pred_check_branch
      %37 = sbr.rel (0) target = $region41
    $region40: #{tpu_custom_call.1} parent=1 // pred_region
      _
    $region41: #{tpu_custom_call.1} parent=1 // pred_fallthru
      _
    // Predicated region
    $region42: #{tpu_custom_call.1} parent=1 // pred_check
      _
    $region43: #{tpu_custom_call.1} parent=1 // pred_check_branch
      %39 = sbr.rel (0) target = $region45
    $region44: #{tpu_custom_call.1} parent=1 // pred_region
      _
    $region45: #{tpu_custom_call.1} parent=1 // pred_fallthru
      _
    %v40 = vld [vmem:[%s3] sm:$0xff]
    %v41 = vld [vmem:[%s3 + $0x8] sm:$0xff]
    %v42 = vld [vmem:[%s3 + $0x10] sm:$0xff]
    %v43 = vld [vmem:[%s3 + $0x18] sm:$0xff]
    %v44 = vld [vmem:[%s0] sm:$0xff]
    %v45 = vld [vmem:[%s4] sm:$0xff]
    %v46 = vld [vmem:[%s4 + $0x8] sm:$0xff]
    %v47 = vld [vmem:[%s4 + $0x10] sm:$0xff]
    %v48 = vld [vmem:[%s4 + $0x18] sm:$0xff]
    %v49 = vld [vmem:[%s1] sm:$0xff]
    %vm50 = vcmask 48128
    %v52 = vsel %vm50, %v45, 0
    %v55 = vsel %vm50, %v46, 0
    %v58 = vsel %vm50, %v47, 0
    %v61 = vsel %vm50, %v48, 0
    %v64 = vsel %vm50, %v49, 0
    %66 = vmatprep.subr.mxu0 0.0
    %67 = vmatpush1.xpose.msra.mxu0 %v64
    %68 = vmatprep.subr.mxu0 0.0
    %69 = vmatpush1.xpose.msra.mxu0 0.0
    %70 = vmatprep.subr.mxu0 0.0
    %71 = vmatpush1.xpose.msra.mxu0 0.0
    %72 = vmatprep.subr.mxu0 0.0
    %73 = vmatpush1.xpose.msra.mxu0 0.0
    %74 = vmatprep.subr.mxu0 0.0
    %75 = vmatpush1.xpose.msra.mxu0 0.0
    %76 = vmatprep.subr.mxu0 0.0
    %77 = vmatpush1.xpose.msra.mxu0 0.0
    %78 = vmatprep.subr.mxu0 0.0
    %79 = vmatpush1.xpose.msra.mxu0 0.0
    %80 = vmatprep.subr.mxu0 0.0
    %81 = vmatpush1.xpose.msra.mxu0 0.0
    %82 = vmatprep.subr.mxu0 0.0
    %83 = vmatpush1.xpose.msra.mxu0 0.0
    %84 = vmatprep.subr.mxu0 0.0
    %85 = vmatpush1.xpose.msra.mxu0 0.0
    %86 = vmatprep.subr.mxu0 0.0
    %87 = vmatpush1.xpose.msra.mxu0 0.0
    %88 = vmatprep.subr.mxu0 0.0
    %89 = vmatpush1.xpose.msra.mxu0 0.0
    %90 = vmatprep.subr.mxu0 0.0
    %91 = vmatpush1.xpose.msra.mxu0 0.0
    %92 = vmatprep.subr.mxu0 0.0
    %93 = vmatpush1.xpose.msra.mxu0 0.0
    %94 = vmatprep.subr.mxu0 0.0
    %95 = vmatpush1.xpose.msra.mxu0 0.0
    %96 = vmatprep.subr.mxu0 0.0
    %97 = vmatpush1.xpose.msra.mxu0 0.0
    %98 = vmatprep.subr.mxu0 0.0
    %99 = vmatpush1.xpose.msra.mxu0 0.0
    %100 = vmatprep.subr.mxu0 0.0
    %101 = vmatpush1.xpose.msra.mxu0 0.0
    %102 = vmatprep.subr.mxu0 0.0
    %103 = vmatpush1.xpose.msra.mxu0 0.0
    %104 = vmatprep.subr.mxu0 0.0
    %105 = vmatpush1.xpose.msra.mxu0 0.0
    %106 = vmatprep.subr.mxu0 0.0
    %107 = vmatpush1.xpose.msra.mxu0 0.0
    %108 = vmatprep.subr.mxu0 0.0
    %109 = vmatpush1.xpose.msra.mxu0 0.0
    %110 = vmatprep.subr.mxu0 0.0
    %111 = vmatpush1.xpose.msra.mxu0 0.0
    %112 = vmatprep.subr.mxu0 0.0
    %113 = vmatpush1.xpose.msra.mxu0 0.0
    %114 = vmatprep.subr.mxu0 0.0
    %115 = vmatpush1.xpose.msra.mxu0 0.0
    %116 = vmatprep.subr.mxu0 0.0
    %117 = vmatpush1.xpose.msra.mxu0 0.0
    %118 = vmatprep.subr.mxu0 0.0
    %119 = vmatpush1.xpose.msra.mxu0 0.0
    %120 = vmatprep.subr.mxu0 0.0
    %121 = vmatpush1.xpose.msra.mxu0 0.0
    %122 = vmatprep.subr.mxu0 0.0
    %123 = vmatpush1.xpose.msra.mxu0 0.0
    %124 = vmatprep.subr.mxu0 0.0
    %125 = vmatpush1.xpose.msra.mxu0 0.0
    %126 = vmatprep.subr.mxu0 0.0
    %127 = vmatpush1.xpose.msra.mxu0 0.0
    %128 = vmatprep.subr.mxu0 0.0
    %129 = vmatpush1.xpose.msra.mxu0 0.0
    %130 = vmatprep.mubr.f32.mxu0 0.0
    %131 = vmatmul.mubr.f32.gmra.mrb[0].mxu0 %v52
    %v132 = vpop.f32.mrb[0].mxu0
    %v133 = vadd.f32 0.0, %v132
    %v134 = vpop.f32.mrb[0].mxu0
    %135 = vmatprep.mubr.f32.mxu0 0.0
    %136 = vmatmul.mubr.f32.gmra.mrb[0].mxu0 %v55
    %v137 = vpop.f32.mrb[0].mxu0
    %v138 = vadd.f32 0.0, %v137
    %v139 = vpop.f32.mrb[0].mxu0
    %140 = vmatprep.mubr.f32.mxu0 0.0
    %141 = vmatmul.mubr.f32.gmra.mrb[0].mxu0 %v58
    %v142 = vpop.f32.mrb[0].mxu0
    %v143 = vadd.f32 0.0, %v142
    %v144 = vpop.f32.mrb[0].mxu0
    %145 = vmatprep.mubr.f32.mxu0 0.0
    %146 = vmatmul.mubr.f32.gmra.mrb[0].mxu0 %v61
    %v147 = vpop.f32.mrb[0].mxu0
    %v148 = vadd.f32 0.0, %v147
    %v149 = vpop.f32.mrb[0].mxu0
    %150 = vdwg.mxu0
    %v152 = vsel %vm50, %v40, 0
    %v155 = vsel %vm50, %v41, 0
    %v158 = vsel %vm50, %v42, 0
    %v161 = vsel %vm50, %v43, 0
    %v164 = vsel %vm50, %v44, 0
    %166 = vmatprep.subr.mxu0 0.0
    %167 = vmatpush1.xpose.msra.mxu0 %v164
    %168 = vmatprep.subr.mxu0 0.0
    %169 = vmatpush1.xpose.msra.mxu0 0.0
    %170 = vmatprep.subr.mxu0 0.0
    %171 = vmatpush1.xpose.msra.mxu0 0.0
    %172 = vmatprep.subr.mxu0 0.0
    %173 = vmatpush1.xpose.msra.mxu0 0.0
    %174 = vmatprep.subr.mxu0 0.0
    %175 = vmatpush1.xpose.msra.mxu0 0.0
    %176 = vmatprep.subr.mxu0 0.0
    %177 = vmatpush1.xpose.msra.mxu0 0.0
    %178 = vmatprep.subr.mxu0 0.0
    %179 = vmatpush1.xpose.msra.mxu0 0.0
    %180 = vmatprep.subr.mxu0 0.0
    %181 = vmatpush1.xpose.msra.mxu0 0.0
    %182 = vmatprep.subr.mxu0 0.0
    %183 = vmatpush1.xpose.msra.mxu0 0.0
    %184 = vmatprep.subr.mxu0 0.0
    %185 = vmatpush1.xpose.msra.mxu0 0.0
    %186 = vmatprep.subr.mxu0 0.0
    %187 = vmatpush1.xpose.msra.mxu0 0.0
    %188 = vmatprep.subr.mxu0 0.0
    %189 = vmatpush1.xpose.msra.mxu0 0.0
    %190 = vmatprep.subr.mxu0 0.0
    %191 = vmatpush1.xpose.msra.mxu0 0.0
    %192 = vmatprep.subr.mxu0 0.0
    %193 = vmatpush1.xpose.msra.mxu0 0.0
    %194 = vmatprep.subr.mxu0 0.0
    %195 = vmatpush1.xpose.msra.mxu0 0.0
    %196 = vmatprep.subr.mxu0 0.0
    %197 = vmatpush1.xpose.msra.mxu0 0.0
    %198 = vmatprep.subr.mxu0 0.0
    %199 = vmatpush1.xpose.msra.mxu0 0.0
    %200 = vmatprep.subr.mxu0 0.0
    %201 = vmatpush1.xpose.msra.mxu0 0.0
    %202 = vmatprep.subr.mxu0 0.0
    %203 = vmatpush1.xpose.msra.mxu0 0.0
    %204 = vmatprep.subr.mxu0 0.0
    %205 = vmatpush1.xpose.msra.mxu0 0.0
    %206 = vmatprep.subr.mxu0 0.0
    %207 = vmatpush1.xpose.msra.mxu0 0.0
    %208 = vmatprep.subr.mxu0 0.0
    %209 = vmatpush1.xpose.msra.mxu0 0.0
    %210 = vmatprep.subr.mxu0 0.0
    %211 = vmatpush1.xpose.msra.mxu0 0.0
    %212 = vmatprep.subr.mxu0 0.0
    %213 = vmatpush1.xpose.msra.mxu0 0.0
    %214 = vmatprep.subr.mxu0 0.0
    %215 = vmatpush1.xpose.msra.mxu0 0.0
    %216 = vmatprep.subr.mxu0 0.0
    %217 = vmatpush1.xpose.msra.mxu0 0.0
    %218 = vmatprep.subr.mxu0 0.0
    %219 = vmatpush1.xpose.msra.mxu0 0.0
    %220 = vmatprep.subr.mxu0 0.0
    %221 = vmatpush1.xpose.msra.mxu0 0.0
    %222 = vmatprep.subr.mxu0 0.0
    %223 = vmatpush1.xpose.msra.mxu0 0.0
    %224 = vmatprep.subr.mxu0 0.0
    %225 = vmatpush1.xpose.msra.mxu0 0.0
    %226 = vmatprep.subr.mxu0 0.0
    %227 = vmatpush1.xpose.msra.mxu0 0.0
    %228 = vmatprep.subr.mxu0 0.0
    %229 = vmatpush1.xpose.msra.mxu0 0.0
    %230 = vmatprep.mubr.f32.mxu0 0.0
    %231 = vmatmul.mubr.f32.gmra.mrb[0].mxu0 %v152
    %v232 = vpop.f32.mrb[0].mxu0
    %v233 = vadd.f32 %v133, %v232
    %v234 = vpop.f32.mrb[0].mxu0
    %235 = vmatprep.mubr.f32.mxu0 0.0
    %236 = vmatmul.mubr.f32.gmra.mrb[0].mxu0 %v155
    %v237 = vpop.f32.mrb[0].mxu0
    %v238 = vadd.f32 %v138, %v237
    %v239 = vpop.f32.mrb[0].mxu0
    %240 = vmatprep.mubr.f32.mxu0 0.0
    %241 = vmatmul.mubr.f32.gmra.mrb[0].mxu0 %v158
    %v242 = vpop.f32.mrb[0].mxu0
    %v243 = vadd.f32 %v143, %v242
    %v244 = vpop.f32.mrb[0].mxu0
    %245 = vmatprep.mubr.f32.mxu0 0.0
    %246 = vmatmul.mubr.f32.gmra.mrb[0].mxu0 %v161
    %v247 = vpop.f32.mrb[0].mxu0
    %v248 = vadd.f32 %v148, %v247
    %v249 = vpop.f32.mrb[0].mxu0
    %250 = vdwg.mxu0
    %v251 = vld [vmem:[%s5] sm:$0xff]
    %v252 = vld [vmem:[%s5 + $0x8] sm:$0xff]
    %v253 = vld [vmem:[%s5 + $0x10] sm:$0xff]
    %v254 = vld [vmem:[%s5 + $0x18] sm:$0xff]
    %v255 = vld [vmem:[%s2] sm:$0xff]
    %v257 = vsel %vm50, %v251, 0
    %v260 = vsel %vm50, %v252, 0
    %v263 = vsel %vm50, %v253, 0
    %v266 = vsel %vm50, %v254, 0
    %v269 = vsel %vm50, %v255, 0
    %271 = vmatprep.subr.mxu0 0.0
    %272 = vmatpush1.xpose.msra.mxu0 %v269
    %273 = vmatprep.subr.mxu0 0.0
    %274 = vmatpush1.xpose.msra.mxu0 0.0
    %275 = vmatprep.subr.mxu0 0.0
    %276 = vmatpush1.xpose.msra.mxu0 0.0
    %277 = vmatprep.subr.mxu0 0.0
    %278 = vmatpush1.xpose.msra.mxu0 0.0
    %279 = vmatprep.subr.mxu0 0.0
    %280 = vmatpush1.xpose.msra.mxu0 0.0
    %281 = vmatprep.subr.mxu0 0.0
    %282 = vmatpush1.xpose.msra.mxu0 0.0
    %283 = vmatprep.subr.mxu0 0.0
    %284 = vmatpush1.xpose.msra.mxu0 0.0
    %285 = vmatprep.subr.mxu0 0.0
    %286 = vmatpush1.xpose.msra.mxu0 0.0
    %287 = vmatprep.subr.mxu0 0.0
    %288 = vmatpush1.xpose.msra.mxu0 0.0
    %289 = vmatprep.subr.mxu0 0.0
    %290 = vmatpush1.xpose.msra.mxu0 0.0
    %291 = vmatprep.subr.mxu0 0.0
    %292 = vmatpush1.xpose.msra.mxu0 0.0
    %293 = vmatprep.subr.mxu0 0.0
    %294 = vmatpush1.xpose.msra.mxu0 0.0
    %295 = vmatprep.subr.mxu0 0.0
    %296 = vmatpush1.xpose.msra.mxu0 0.0
    %297 = vmatprep.subr.mxu0 0.0
    %298 = vmatpush1.xpose.msra.mxu0 0.0
    %299 = vmatprep.subr.mxu0 0.0
    %300 = vmatpush1.xpose.msra.mxu0 0.0
    %301 = vmatprep.subr.mxu0 0.0
    %302 = vmatpush1.xpose.msra.mxu0 0.0
    %303 = vmatprep.subr.mxu0 0.0
    %304 = vmatpush1.xpose.msra.mxu0 0.0
    %305 = vmatprep.subr.mxu0 0.0
    %306 = vmatpush1.xpose.msra.mxu0 0.0
    %307 = vmatprep.subr.mxu0 0.0
    %308 = vmatpush1.xpose.msra.mxu0 0.0
    %309 = vmatprep.subr.mxu0 0.0
    %310 = vmatpush1.xpose.msra.mxu0 0.0
    %311 = vmatprep.subr.mxu0 0.0
    %312 = vmatpush1.xpose.msra.mxu0 0.0
    %313 = vmatprep.subr.mxu0 0.0
    %314 = vmatpush1.xpose.msra.mxu0 0.0
    %315 = vmatprep.subr.mxu0 0.0
    %316 = vmatpush1.xpose.msra.mxu0 0.0
    %317 = vmatprep.subr.mxu0 0.0
    %318 = vmatpush1.xpose.msra.mxu0 0.0
    %319 = vmatprep.subr.mxu0 0.0
    %320 = vmatpush1.xpose.msra.mxu0 0.0
    %321 = vmatprep.subr.mxu0 0.0
    %322 = vmatpush1.xpose.msra.mxu0 0.0
    %323 = vmatprep.subr.mxu0 0.0
    %324 = vmatpush1.xpose.msra.mxu0 0.0
    %325 = vmatprep.subr.mxu0 0.0
    %326 = vmatpush1.xpose.msra.mxu0 0.0
    %327 = vmatprep.subr.mxu0 0.0
    %328 = vmatpush1.xpose.msra.mxu0 0.0
    %329 = vmatprep.subr.mxu0 0.0
    %330 = vmatpush1.xpose.msra.mxu0 0.0
    %331 = vmatprep.subr.mxu0 0.0
    %332 = vmatpush1.xpose.msra.mxu0 0.0
    %333 = vmatprep.subr.mxu0 0.0
    %334 = vmatpush1.xpose.msra.mxu0 0.0
    %335 = vmatprep.mubr.f32.mxu0 0.0
    %336 = vmatmul.mubr.f32.gmra.mrb[0].mxu0 %v257
    %v337 = vpop.f32.mrb[0].mxu0
    %v338 = vadd.f32 0.0, %v337
    %v339 = vpop.f32.mrb[0].mxu0
    %340 = vmatprep.mubr.f32.mxu0 0.0
    %341 = vmatmul.mubr.f32.gmra.mrb[0].mxu0 %v260
    %v342 = vpop.f32.mrb[0].mxu0
    %v343 = vadd.f32 0.0, %v342
    %v344 = vpop.f32.mrb[0].mxu0
    %345 = vmatprep.mubr.f32.mxu0 0.0
    %346 = vmatmul.mubr.f32.gmra.mrb[0].mxu0 %v263
    %v347 = vpop.f32.mrb[0].mxu0
    %v348 = vadd.f32 0.0, %v347
    %v349 = vpop.f32.mrb[0].mxu0
    %350 = vmatprep.mubr.f32.mxu0 0.0
    %351 = vmatmul.mubr.f32.gmra.mrb[0].mxu0 %v266
    %v352 = vpop.f32.mrb[0].mxu0
    %v353 = vadd.f32 0.0, %v352
    %v354 = vpop.f32.mrb[0].mxu0
    %355 = vdwg.mxu0
    %v356 = vadd.f32 %v233, %v338
    %v357 = vadd.f32 %v238, %v343
    %v358 = vadd.f32 %v243, %v348
    %v359 = vadd.f32 %v248, %v353
    %v360 = vld [vmem:[%s6] sm:$0xff]
    %v361 = vld [vmem:[%s6 + $0x8] sm:$0xff]
    %v362 = vld [vmem:[%s6 + $0x10] sm:$0xff]
    %v363 = vld [vmem:[%s6 + $0x18] sm:$0xff]
    %365 = vset.pattern.permute.xlu0 0
    %366 = vperm.xlu0 %365, %v360
    %v367 = vpop.permute.xlu0 %366
    %370 = vset.pattern.permute.xlu0 0
    %371 = vperm.xlu0 %370, %v361
    %v372 = vpop.permute.xlu0 %371
    %375 = vset.pattern.permute.xlu0 0
    %376 = vperm.xlu0 %375, %v362
    %v377 = vpop.permute.xlu0 %376
    %380 = vset.pattern.permute.xlu0 0
    %381 = vperm.xlu0 %380, %v363
    %v382 = vpop.permute.xlu0 %381
    %v384 = vadd.f32 %v356, %v367
    %v385 = vadd.f32 %v357, %v372
    %v386 = vadd.f32 %v358, %v377
    %v387 = vadd.f32 %v359, %v382
    %v388 = vtanh.pop %v384
    %v389 = vtanh.pop %v385
    %v390 = vtanh.pop %v386
    %v391 = vtanh.pop %v387
    %v392 = vld [vmem:[%s7] sm:$0xff]
    %v393 = vld [vmem:[%s7 + $0x8] sm:$0xff]
    %v394 = vld [vmem:[%s7 + $0x10] sm:$0xff]
    %v395 = vld [vmem:[%s7 + $0x18] sm:$0xff]
    %v396 = vld [vmem:[%s8] sm:$0xff]
    %v397 = vld [vmem:[%s8 + $0x8] sm:$0xff]
    %v398 = vld [vmem:[%s8 + $0x10] sm:$0xff]
    %v399 = vld [vmem:[%s8 + $0x18] sm:$0xff]
    %401 = vset.pattern.permute.xlu0 0
    %402 = vperm.xlu0 %401, %v396
    %v403 = vpop.permute.xlu0 %402
    %406 = vset.pattern.permute.xlu0 0
    %407 = vperm.xlu0 %406, %v397
    %v408 = vpop.permute.xlu0 %407
    %411 = vset.pattern.permute.xlu0 0
    %412 = vperm.xlu0 %411, %v398
    %v413 = vpop.permute.xlu0 %412
    %416 = vset.pattern.permute.xlu0 0
    %417 = vperm.xlu0 %416, %v399
    %v418 = vpop.permute.xlu0 %417
    %vm420 = vcmask 261120
    %v422 = vsel %vm420, %v392, 0
    %v425 = vsel %vm420, %v393, 0
    %v428 = vsel %vm420, %v394, 0
    %v431 = vsel %vm420, %v395, 0
    %433 = vmatprep.subr.mxu0 0.0
    %434 = vmatpush1.msra.mxu0 %v388
    %435 = vmatprep.subr.mxu0 0.0
    %436 = vmatpush1.msra.mxu0 %v389
    %437 = vmatprep.subr.mxu0 0.0
    %438 = vmatpush1.msra.mxu0 %v390
    %439 = vmatprep.subr.mxu0 0.0
    %440 = vmatpush1.msra.mxu0 %v391
    %441 = vmatprep.subr.mxu0 0.0
    %442 = vmatpush1.msra.mxu0 0.0
    %443 = vmatprep.subr.mxu0 0.0
    %444 = vmatpush1.msra.mxu0 0.0
    %445 = vmatprep.subr.mxu0 0.0
    %446 = vmatpush1.msra.mxu0 0.0
    %447 = vmatprep.subr.mxu0 0.0
    %448 = vmatpush1.msra.mxu0 0.0
    %449 = vmatprep.subr.mxu0 0.0
    %450 = vmatpush1.msra.mxu0 0.0
    %451 = vmatprep.subr.mxu0 0.0
    %452 = vmatpush1.msra.mxu0 0.0
    %453 = vmatprep.subr.mxu0 0.0
    %454 = vmatpush1.msra.mxu0 0.0
    %455 = vmatprep.subr.mxu0 0.0
    %456 = vmatpush1.msra.mxu0 0.0
    %457 = vmatprep.subr.mxu0 0.0
    %458 = vmatpush1.msra.mxu0 0.0
    %459 = vmatprep.subr.mxu0 0.0
    %460 = vmatpush1.msra.mxu0 0.0
    %461 = vmatprep.subr.mxu0 0.0
    %462 = vmatpush1.msra.mxu0 0.0
    %463 = vmatprep.subr.mxu0 0.0
    %464 = vmatpush1.msra.mxu0 0.0
    %465 = vmatprep.subr.mxu0 0.0
    %466 = vmatpush1.msra.mxu0 0.0
    %467 = vmatprep.subr.mxu0 0.0
    %468 = vmatpush1.msra.mxu0 0.0
    %469 = vmatprep.subr.mxu0 0.0
    %470 = vmatpush1.msra.mxu0 0.0
    %471 = vmatprep.subr.mxu0 0.0
    %472 = vmatpush1.msra.mxu0 0.0
    %473 = vmatprep.subr.mxu0 0.0
    %474 = vmatpush1.msra.mxu0 0.0
    %475 = vmatprep.subr.mxu0 0.0
    %476 = vmatpush1.msra.mxu0 0.0
    %477 = vmatprep.subr.mxu0 0.0
    %478 = vmatpush1.msra.mxu0 0.0
    %479 = vmatprep.subr.mxu0 0.0
    %480 = vmatpush1.msra.mxu0 0.0
    %481 = vmatprep.subr.mxu0 0.0
    %482 = vmatpush1.msra.mxu0 0.0
    %483 = vmatprep.subr.mxu0 0.0
    %484 = vmatpush1.msra.mxu0 0.0
    %485 = vmatprep.subr.mxu0 0.0
    %486 = vmatpush1.msra.mxu0 0.0
    %487 = vmatprep.subr.mxu0 0.0
    %488 = vmatpush1.msra.mxu0 0.0
    %489 = vmatprep.subr.mxu0 0.0
    %490 = vmatpush1.msra.mxu0 0.0
    %491 = vmatprep.subr.mxu0 0.0
    %492 = vmatpush1.msra.mxu0 0.0
    %493 = vmatprep.subr.mxu0 0.0
    %494 = vmatpush1.msra.mxu0 0.0
    %495 = vmatprep.subr.mxu0 0.0
    %496 = vmatpush1.msra.mxu0 0.0
    %497 = vmatprep.mubr.f32.mxu0 0.0
    %498 = vmatmul.mubr.f32.gmra.mrb[0].mxu0 %v422
    %v499 = vpop.f32.mrb[0].mxu0
    %v500 = vadd.f32 %v403, %v499
    %v501 = vpop.f32.mrb[0].mxu0
    %502 = vmatprep.mubr.f32.mxu0 0.0
    %503 = vmatmul.mubr.f32.gmra.mrb[0].mxu0 %v425
    %v504 = vpop.f32.mrb[0].mxu0
    %v505 = vadd.f32 %v408, %v504
    %v506 = vpop.f32.mrb[0].mxu0
    %507 = vmatprep.mubr.f32.mxu0 0.0
    %508 = vmatmul.mubr.f32.gmra.mrb[0].mxu0 %v428
    %v509 = vpop.f32.mrb[0].mxu0
    %v510 = vadd.f32 %v413, %v509
    %v511 = vpop.f32.mrb[0].mxu0
    %512 = vmatprep.mubr.f32.mxu0 0.0
    %513 = vmatmul.mubr.f32.gmra.mrb[0].mxu0 %v431
    %v514 = vpop.f32.mrb[0].mxu0
    %v515 = vadd.f32 %v418, %v514
    %v516 = vpop.f32.mrb[0].mxu0
    %517 = vdwg.mxu0
    %v518 = vtanh.pop %v500
    %v519 = vtanh.pop %v505
    %v520 = vtanh.pop %v510
    %v521 = vtanh.pop %v515
    %v522 = vld [vmem:[%s9] sm:$0x1]
    %s523 = sld [smem:[#allocation2]]
    %v524 = vstv %s523
    %v526 = vsel %vm420, %v522, 0
    %528 = vmatprep.subr.mxu0 0.0
    %529 = vmatpush1.msra.mxu0 %v518
    %530 = vmatprep.subr.mxu0 0.0
    %531 = vmatpush1.msra.mxu0 %v519
    %532 = vmatprep.subr.mxu0 0.0
    %533 = vmatpush1.msra.mxu0 %v520
    %534 = vmatprep.subr.mxu0 0.0
    %535 = vmatpush1.msra.mxu0 %v521
    %536 = vmatprep.subr.mxu0 0.0
    %537 = vmatpush1.msra.mxu0 0.0
    %538 = vmatprep.subr.mxu0 0.0
    %539 = vmatpush1.msra.mxu0 0.0
    %540 = vmatprep.subr.mxu0 0.0
    %541 = vmatpush1.msra.mxu0 0.0
    %542 = vmatprep.subr.mxu0 0.0
    %543 = vmatpush1.msra.mxu0 0.0
    %544 = vmatprep.subr.mxu0 0.0
    %545 = vmatpush1.msra.mxu0 0.0
    %546 = vmatprep.subr.mxu0 0.0
    %547 = vmatpush1.msra.mxu0 0.0
    %548 = vmatprep.subr.mxu0 0.0
    %549 = vmatpush1.msra.mxu0 0.0
    %550 = vmatprep.subr.mxu0 0.0
    %551 = vmatpush1.msra.mxu0 0.0
    %552 = vmatprep.subr.mxu0 0.0
    %553 = vmatpush1.msra.mxu0 0.0
    %554 = vmatprep.subr.mxu0 0.0
    %555 = vmatpush1.msra.mxu0 0.0
    %556 = vmatprep.subr.mxu0 0.0
    %557 = vmatpush1.msra.mxu0 0.0
    %558 = vmatprep.subr.mxu0 0.0
    %559 = vmatpush1.msra.mxu0 0.0
    %560 = vmatprep.subr.mxu0 0.0
    %561 = vmatpush1.msra.mxu0 0.0
    %562 = vmatprep.subr.mxu0 0.0
    %563 = vmatpush1.msra.mxu0 0.0
    %564 = vmatprep.subr.mxu0 0.0
    %565 = vmatpush1.msra.mxu0 0.0
    %566 = vmatprep.subr.mxu0 0.0
    %567 = vmatpush1.msra.mxu0 0.0
    %568 = vmatprep.subr.mxu0 0.0
    %569 = vmatpush1.msra.mxu0 0.0
    %570 = vmatprep.subr.mxu0 0.0
    %571 = vmatpush1.msra.mxu0 0.0
    %572 = vmatprep.subr.mxu0 0.0
    %573 = vmatpush1.msra.mxu0 0.0
    %574 = vmatprep.subr.mxu0 0.0
    %575 = vmatpush1.msra.mxu0 0.0
    %576 = vmatprep.subr.mxu0 0.0
    %577 = vmatpush1.msra.mxu0 0.0
    %578 = vmatprep.subr.mxu0 0.0
    %579 = vmatpush1.msra.mxu0 0.0
    %580 = vmatprep.subr.mxu0 0.0
    %581 = vmatpush1.msra.mxu0 0.0
    %582 = vmatprep.subr.mxu0 0.0
    %583 = vmatpush1.msra.mxu0 0.0
    %584 = vmatprep.subr.mxu0 0.0
    %585 = vmatpush1.msra.mxu0 0.0
    %586 = vmatprep.subr.mxu0 0.0
    %587 = vmatpush1.msra.mxu0 0.0
    %588 = vmatprep.subr.mxu0 0.0
    %589 = vmatpush1.msra.mxu0 0.0
    %590 = vmatprep.subr.mxu0 0.0
    %591 = vmatpush1.msra.mxu0 0.0
    %592 = vmatprep.mubr.f32.mxu0 0.0
    %593 = vmatmul.mubr.f32.gmra.mrb[0].mxu0 %v526
    %v594 = vpop.f32.mrb[0].mxu0
    %v595 = vadd.f32 %v524, %v594
    %v596 = vpop.f32.mrb[0].mxu0
    %597 = vdwg.mxu0
    %vm598 = vcmask 57344
    %599 = vst.msk [vmem:[#allocation3] sm:$0x1] %vm598, %v595
    // Predicated region
    $region46: #{tpu_custom_call.1} parent=1 // pred_check
      _
    $region47: #{tpu_custom_call.1} parent=1 // pred_check_branch
      %601 = sbr.rel (0) target = $region49
    $region48: #{tpu_custom_call.1} parent=1 // pred_region
      %s603 = ssub.s32 16, 16
      %604 = vsyncadd [#allocation4], %s603
      %s606 = sshll.u32 [#allocation3], 4
      %s607 = int_to_ptr.vmem [resolvable:$true] %s606
      %609 = dma.vmem_to_hbm [thread:$0]  %s607, 16, %s11, [#allocation4]
    $region49: #{tpu_custom_call.1} parent=1 // pred_fallthru
      _
    // Predicated region
    $region50: #{tpu_custom_call.1} parent=1 // pred_check
      _
    $region51: #{tpu_custom_call.1} parent=1 // pred_check_branch
      %611 = sbr.rel (0) target = $region53
    $region52: #{tpu_custom_call.1} parent=1 // pred_region
      %612 = dma.done [#allocation4], 16
    $region53: #{tpu_custom_call.1} parent=1 // pred_fallthru
      _
    %613 = vsyncpa [#allocation4], 1

</llo_original>
